<compile_context>
chip_gen: v5e
topology: v5e:2x2
jax: 0.10.0
libtpu: 0.0.40
codegen_flags: <defaults>
</compile_context>

<pallas_src>
import functools

import jax
import jax.numpy as jnp
from jax.experimental import pallas as pl
from jax.experimental.pallas import tpu as pltpu


def _device_defaults():
    """Per-TPU-generation (block_bytes, num_chunks, vmem_limit_bytes)."""
    kind = ""
    try:
        kind = jax.devices()[0].device_kind.lower()
    except Exception:
        pass
    if "7" in kind:                       # v7x: 2 TCs, 3.2 TB/s HBM, 64 MiB VMEM
        return 8 * 1024 * 1024, 2, 48 << 20
    if "v6" in kind:                      # v6e: 1 TC, 32 MiB scoped-VMEM default
        return 4 * 1024 * 1024, 1, None
    return 2 * 1024 * 1024, 1, None       # v5e / unknown: conservative


def _focal_loss_kernel(wm1_ref, x_ref, t_ref, out_ref, acc_ref, *,
                       gamma, n_rows, tile_rows, steps_per_chunk, needs_mask):
    c = pl.program_id(0)          # "parallel" axis: row super-chunks
    s = pl.program_id(1)          # "arbitrary" axis: steps within a chunk

    # Reset the per-chunk lane accumulator at the start of every chunk.
    @pl.when(s == 0)
    def _():
        acc_ref[...] = jnp.zeros_like(acc_ref)

    def focal_block():
        x = x_ref[...].astype(jnp.float32)          # (tile_rows, C) logits
        t = t_ref[...].astype(jnp.float32)          # (tile_rows, C) targets
        wm1 = wm1_ref[...].astype(jnp.float32)      # (1, C) pos_weight - 1

        # Numerically stable BCE-with-logits with pos_weight (matches PyTorch):
        #   log_weight = 1 + (pos_weight - 1) * t
        #   bce = (1 - t) * x + log_weight * (log1p(exp(-|x|)) + max(-x, 0))
        log_weight = 1.0 + wm1 * t
        softplus_neg_abs = jnp.log1p(jnp.exp(-jnp.abs(x))) + jnp.maximum(-x, 0.0)
        bce = (1.0 - t) * x + log_weight * softplus_neg_abs

        one_minus_pt = 1.0 - jnp.exp(-bce)          # 1 - p_t, in [0, 1)

        g_int = int(gamma)
        if float(g_int) == gamma and 0 <= g_int <= 4:
            # Small-integer gamma: repeated VPU multiplies, no pow on the EUP.
            if g_int == 0:
                return bce
            mod = one_minus_pt
            for _ in range(g_int - 1):
                mod = mod * one_minus_pt
            return mod * bce
        # Non-integer gamma: pow via exp/log (EUP); exact-zero base -> 0.
        mod = jnp.exp(jnp.float32(gamma) * jnp.log(one_minus_pt))
        mod = jnp.where(one_minus_pt > 0.0, mod, 0.0)
        return mod * bce

    if needs_mask:
        # Only the one block straddling n_rows pays for the mask; all other
        # steps accumulate unmasked (no iota/compare/select in steady state).
        row_start = (c * steps_per_chunk + s) * tile_rows
        is_tail = row_start + tile_rows > n_rows

        @pl.when(jnp.logical_not(is_tail))
        def _():
            acc_ref[...] += jnp.sum(focal_block(), axis=0, keepdims=True)

        @pl.when(is_tail)
        def _():
            f = focal_block()
            row_ids = row_start + jax.lax.broadcasted_iota(jnp.int32, f.shape, 0)
            f = jnp.where(row_ids < n_rows, f, 0.0)
            acc_ref[...] += jnp.sum(f, axis=0, keepdims=True)
    else:
        acc_ref[...] += jnp.sum(focal_block(), axis=0, keepdims=True)

    # Finalize once per chunk: single cross-lane reduce + lane-dense store.
    @pl.when(s == pl.num_programs(1) - 1)
    def _():
        out_ref[...] = jnp.full((1, 128), jnp.sum(acc_ref[...]),
                                dtype=jnp.float32)


def focal_balanced_loss(logits, targets, pos_weight, gamma=2.0, *,
                        block_bytes=None, num_chunks=None,
                        vmem_limit_bytes=None):
    """Pallas-backed FocalBalancedLoss forward. Returns a scalar f32.

    logits/targets: (N, C); bf16 inputs are recommended (kernel upcasts to f32).
    pos_weight: (C,).
    """
    N, C = logits.shape
    assert targets.shape == (N, C)
    assert pos_weight.shape == (C,)

    d_block, d_chunks, d_vmem = _device_defaults()
    block_bytes = d_block if block_bytes is None else int(block_bytes)
    num_chunks = d_chunks if num_chunks is None else int(num_chunks)
    vmem_limit_bytes = d_vmem if vmem_limit_bytes is None else int(vmem_limit_bytes)

    # Hoisted out of the kernel: pos_weight - 1, as a (1, C) f32 row.
    wm1 = (pos_weight.astype(jnp.float32) - 1.0).reshape(1, C)

    # Rows per block: ~block_bytes of f32 per input block, multiple of 8
    # sublanes; if N is small, use the full row dim (always a legal block).
    rows_target = max(8, (block_bytes // (C * 4)) // 8 * 8)
    tile_rows = N if N <= rows_target else rows_target

    total_steps = -(-N // tile_rows)
    # Chunk count must divide the step count: no padded grid steps (wasted
    # DMA/compute) and equal work per v7x TensorCore.
    n_chunks = max(1, min(num_chunks, total_steps))
    while n_chunks > 1 and total_steps % n_chunks != 0:
        n_chunks -= 1
    steps_per_chunk = total_steps // n_chunks

    kernel = functools.partial(
        _focal_loss_kernel,
        gamma=float(gamma),
        n_rows=N,
        tile_rows=tile_rows,
        steps_per_chunk=steps_per_chunk,
        needs_mask=(N % tile_rows) != 0,
    )

    def data_map(c, s):
        return (c * steps_per_chunk + s, 0)

    cp_kwargs = dict(dimension_semantics=("parallel", "arbitrary"))
    if vmem_limit_bytes is not None:
        cp_kwargs["vmem_limit_bytes"] = vmem_limit_bytes

    out = pl.pallas_call(
        kernel,
        out_shape=jax.ShapeDtypeStruct((1, n_chunks * 128), jnp.float32),
        grid_spec=pltpu.PrefetchScalarGridSpec(
            num_scalar_prefetch=0,
            grid=(n_chunks, steps_per_chunk),
            in_specs=[
                pl.BlockSpec((1, C), lambda c, s: (0, 0)),       # pos_weight - 1
                pl.BlockSpec((tile_rows, C), data_map),          # logits
                pl.BlockSpec((tile_rows, C), data_map),          # targets
            ],
            # Lane-dense per-chunk partial sums, written once per chunk.
            out_specs=pl.BlockSpec((1, 128), lambda c, s: (0, c)),
            scratch_shapes=[pltpu.VMEM((1, C), jnp.float32)],     # lane acc
        ),
        compiler_params=pltpu.CompilerParams(**cp_kwargs),
    )(wm1, logits, targets)

    chunk_sums = out.reshape(n_chunks, 128)[:, 0]
    return jnp.sum(chunk_sums) / jnp.float32(N * C)


def _reference_loss(logits, targets, pos_weight, gamma=2.0):
    """Pure-JAX reference mirroring F.binary_cross_entropy_with_logits + focal."""
    x = logits.astype(jnp.float32)
    t = targets.astype(jnp.float32)
    w = pos_weight.astype(jnp.float32)
    log_weight = 1.0 + (w - 1.0) * t
    bce = (1.0 - t) * x + log_weight * (
        jnp.log1p(jnp.exp(-jnp.abs(x))) + jnp.maximum(-x, 0.0))
    p_t = jnp.exp(-bce)
    return jnp.mean((1.0 - p_t) ** gamma * bce)


if __name__ == "__main__":
    key = jax.random.PRNGKey(0)
    k1, k2, k3, k4, k5 = jax.random.split(key, 5)
    C = 256
    pos_weight = 1.0 + 9.0 * jax.random.uniform(k3, (C,), dtype=jnp.float32)

    def check(name, loss, ref):
        assert jnp.allclose(loss, ref, rtol=1e-4, atol=1e-6), (name, loss, ref)

    # Case 1: small multi-label batch, per-device default tiling.
    N = 16
    logits = jax.random.normal(k1, (N, C), dtype=jnp.float32) * 2.0
    targets = (jax.random.uniform(k2, (N, C)) < 0.1).astype(jnp.float32)
    loss1 = jax.block_until_ready(focal_balanced_loss(logits, targets, pos_weight))
    check("case1", loss1, _reference_loss(logits, targets, pos_weight))

    # Case 2: N % 8 != 0 at the default block size (block = full row dim).
    N2 = 20
    logits2 = jax.random.normal(k4, (N2, C), dtype=jnp.float32) * 2.0
    targets2 = (jax.random.uniform(k5, (N2, C)) < 0.1).astype(jnp.float32)
    loss2 = jax.block_until_ready(focal_balanced_loss(logits2, targets2, pos_weight))
    check("case2", loss2, _reference_loss(logits2, targets2, pos_weight))

    # Case 3: multi-step grid, 2 chunks, masked tail block
    # (N=28, tile_rows=8 -> 4 steps = 2 chunks x 2 steps, tail has 4 valid rows).
    N3 = 28
    logits3 = jax.random.normal(k1, (N3, C), dtype=jnp.float32) * 2.0
    targets3 = (jax.random.uniform(k2, (N3, C)) < 0.1).astype(jnp.float32)
    loss3 = jax.block_until_ready(
        focal_balanced_loss(logits3, targets3, pos_weight,
                            block_bytes=8 * C * 4, num_chunks=2))
    check("case3", loss3, _reference_loss(logits3, targets3, pos_weight))

    # Case 4: bf16 inputs (recommended call-site dtype; kernel upcasts to f32).
    loss4 = jax.block_until_ready(
        focal_balanced_loss(logits.astype(jnp.bfloat16),
                            targets.astype(jnp.bfloat16), pos_weight))
    check("case4", loss4,
          _reference_loss(logits.astype(jnp.bfloat16),
                          targets.astype(jnp.bfloat16), pos_weight))

    # Case 5: non-integer gamma (exp/log pow path).
    loss5 = jax.block_until_ready(
        focal_balanced_loss(logits, targets, pos_weight, gamma=1.5))
    check("case5", loss5, _reference_loss(logits, targets, pos_weight, gamma=1.5))

    print("KERNEL_OK")
</pallas_src>

<mosaic_0001>
module attributes {stable_mosaic.version = 11 : i64} {
  func.func @_focal_loss_kernel(%arg0: i32, %arg1: i32, %arg2: memref<1x256xf32, #tpu.memory_space<vmem>>, %arg3: memref<16x256xf32, #tpu.memory_space<vmem>>, %arg4: memref<16x256xf32, #tpu.memory_space<vmem>>, %arg5: memref<1x128xf32, #tpu.memory_space<vmem>>, %arg6: memref<1x256xf32, #tpu.memory_space<vmem>>) attributes {dimension_semantics = [#tpu.dimension_semantics<parallel>, #tpu.dimension_semantics<arbitrary>], iteration_bounds = array<i64: 1, 1>, scalar_prefetch = 0 : i64, scratch_operands = 1 : i64, tpu.core_type = #tpu.core_type<tc>, window_params = [{pipeline_mode = #tpu.pipeline_mode<synchronous>, transform_indices = @transform_0, window_bounds = array<i64: 1, 256>}, {transform_indices = @transform_1, window_bounds = array<i64: 16, 256>}, {transform_indices = @transform_2, window_bounds = array<i64: 16, 256>}, {transform_indices = @transform_3, window_bounds = array<i64: 1, 128>}]} {
    %c0_i32 = arith.constant 0 : i32
    %0 = arith.cmpi eq, %arg1, %c0_i32 : i32
    %1 = arith.extui %0 : i1 to i32
    %c0_i32_0 = arith.constant 0 : i32
    %2 = arith.cmpi ne, %1, %c0_i32_0 : i32
    scf.if %2 {
      %cst_19 = arith.constant 0.000000e+00 : f32
      %40 = vector.broadcast %cst_19 : f32 to vector<1x256xf32>
      %c0_20 = arith.constant 0 : index
      %c0_21 = arith.constant 0 : index
      %41 = vector.load %arg6[%c0_20, %c0_21] : memref<1x256xf32, #tpu.memory_space<vmem>>, vector<1x256xf32>
      tpu.vector_store %arg6[%c0_20, %c0_21], %40 {strides = array<i32>} : memref<1x256xf32, #tpu.memory_space<vmem>>, vector<1x256xf32>,
    } else {
    }
    %c0 = arith.constant 0 : index
    %c0_1 = arith.constant 0 : index
    %3 = vector.load %arg6[%c0, %c0_1] : memref<1x256xf32, #tpu.memory_space<vmem>>, vector<1x256xf32>
    %c0_2 = arith.constant 0 : index
    %c0_3 = arith.constant 0 : index
    %4 = vector.load %arg3[%c0_2, %c0_3] : memref<16x256xf32, #tpu.memory_space<vmem>>, vector<16x256xf32>
    %c0_4 = arith.constant 0 : index
    %c0_5 = arith.constant 0 : index
    %5 = vector.load %arg4[%c0_4, %c0_5] : memref<16x256xf32, #tpu.memory_space<vmem>>, vector<16x256xf32>
    %c0_6 = arith.constant 0 : index
    %c0_7 = arith.constant 0 : index
    %6 = vector.load %arg2[%c0_6, %c0_7] : memref<1x256xf32, #tpu.memory_space<vmem>>, vector<1x256xf32>
    %7 = vector.broadcast %6 : vector<1x256xf32> to vector<16x256xf32>
    %8 = arith.mulf %7, %5 : vector<16x256xf32>
    %cst = arith.constant 1.000000e+00 : f32
    %9 = vector.broadcast %cst : f32 to vector<16x256xf32>
    %10 = arith.addf %9, %8 : vector<16x256xf32>
    %11 = math.absf %4 : vector<16x256xf32>
    %cst_8 = arith.constant 0.000000e+00 : f32
    %12 = vector.broadcast %cst_8 : f32 to vector<16x256xf32>
    %13 = arith.subf %12, %11 : vector<16x256xf32>
    %14 = math.exp %13 : vector<16x256xf32>
    %15 = math.log1p %14 : vector<16x256xf32>
    %cst_9 = arith.constant 0.000000e+00 : f32
    %16 = vector.broadcast %cst_9 : f32 to vector<16x256xf32>
    %17 = arith.subf %16, %4 : vector<16x256xf32>
    %cst_10 = arith.constant 0.000000e+00 : f32
    %18 = vector.broadcast %cst_10 : f32 to vector<16x256xf32>
    %19 = arith.maximumf %17, %18 : vector<16x256xf32>
    %20 = arith.addf %15, %19 : vector<16x256xf32>
    %cst_11 = arith.constant 1.000000e+00 : f32
    %21 = vector.broadcast %cst_11 : f32 to vector<16x256xf32>
    %22 = arith.subf %21, %5 : vector<16x256xf32>
    %23 = arith.mulf %22, %4 : vector<16x256xf32>
    %24 = arith.mulf %10, %20 : vector<16x256xf32>
    %25 = arith.addf %23, %24 : vector<16x256xf32>
    %cst_12 = arith.constant 0.000000e+00 : f32
    %26 = vector.broadcast %cst_12 : f32 to vector<16x256xf32>
    %27 = arith.subf %26, %25 : vector<16x256xf32>
    %28 = math.exp %27 : vector<16x256xf32>
    %cst_13 = arith.constant 1.000000e+00 : f32
    %29 = vector.broadcast %cst_13 : f32 to vector<16x256xf32>
    %30 = arith.subf %29, %28 : vector<16x256xf32>
    %31 = arith.mulf %30, %30 : vector<16x256xf32>
    %32 = arith.mulf %31, %25 : vector<16x256xf32>
    %cst_14 = arith.constant dense<0.000000e+00> : vector<256xf32>
    %33 = vector.multi_reduction <add>, %32, %cst_14 [0] : vector<16x256xf32> to vector<256xf32>
    %34 = vector.shape_cast %33 : vector<256xf32> to vector<1x256xf32>
    %35 = arith.addf %3, %34 : vector<1x256xf32>
    %c0_15 = arith.constant 0 : index
    %c0_16 = arith.constant 0 : index
    %36 = vector.load %arg6[%c0_15, %c0_16] : memref<1x256xf32, #tpu.memory_space<vmem>>, vector<1x256xf32>
    tpu.vector_store %arg6[%c0_15, %c0_16], %35 {strides = array<i32>} : memref<1x256xf32, #tpu.memory_space<vmem>>, vector<1x256xf32>,
    %c0_i32_17 = arith.constant 0 : i32
    %37 = arith.cmpi eq, %arg1, %c0_i32_17 : i32
    %38 = arith.extui %37 : i1 to i32
    %c0_i32_18 = arith.constant 0 : i32
    %39 = arith.cmpi ne, %38, %c0_i32_18 : i32
    scf.if %39 {
      %c0_19 = arith.constant 0 : index
      %c0_20 = arith.constant 0 : index
      %40 = vector.load %arg6[%c0_19, %c0_20] : memref<1x256xf32, #tpu.memory_space<vmem>>, vector<1x256xf32>
      %41 = vector.shape_cast %40 : vector<1x256xf32> to vector<1x1x256xf32>
      %cst_21 = arith.constant dense<0.000000e+00> : vector<1xf32>
      %42 = vector.multi_reduction <add>, %41, %cst_21 [1, 2] : vector<1x1x256xf32> to vector<1xf32>
      %43 = vector.shape_cast %42 : vector<1xf32> to vector<1x1x1xf32>
      %44 = vector.extract %43[0, 0, 0] : f32 from vector<1x1x1xf32>
      %45 = vector.broadcast %44 : f32 to vector<1x128xf32>
      %c0_22 = arith.constant 0 : index
      %c0_23 = arith.constant 0 : index
      %46 = vector.load %arg5[%c0_22, %c0_23] : memref<1x128xf32, #tpu.memory_space<vmem>>, vector<1x128xf32>
      tpu.vector_store %arg5[%c0_22, %c0_23], %45 {strides = array<i32>} : memref<1x128xf32, #tpu.memory_space<vmem>>, vector<1x128xf32>,
    } else {
    }
    return
  }
  func.func @transform_0(%arg0: i32, %arg1: i32) -> (i32, i32) {
    %c0_i32 = arith.constant 0 : i32
    %c0_i32_0 = arith.constant 0 : i32
    %c0_i32_1 = arith.constant 0 : i32
    return %c0_i32, %c0_i32_0 : i32, i32
  }
  func.func @transform_1(%arg0: i32, %arg1: i32) -> (i32, i32) {
    %c1_i32 = arith.constant 1 : i32
    %0 = arith.muli %arg0, %c1_i32 : i32
    %1 = arith.addi %0, %arg1 : i32
    %c0_i32 = arith.constant 0 : i32
    %c0_i32_0 = arith.constant 0 : i32
    return %1, %c0_i32 : i32, i32
  }
  func.func @transform_2(%arg0: i32, %arg1: i32) -> (i32, i32) {
    %c1_i32 = arith.constant 1 : i32
    %0 = arith.muli %arg0, %c1_i32 : i32
    %1 = arith.addi %0, %arg1 : i32
    %c0_i32 = arith.constant 0 : i32
    %c0_i32_0 = arith.constant 0 : i32
    return %1, %c0_i32 : i32, i32
  }
  func.func @transform_3(%arg0: i32, %arg1: i32) -> (i32, i32) {
    %c0_i32 = arith.constant 0 : i32
    %c0_i32_0 = arith.constant 0 : i32
    return %c0_i32, %arg0 : i32, i32
  }
}

</mosaic_0001>

<llo_original>
// kernel: tpu_custom_call.1
$region0: #{tpu_custom_call.1}
  #allocation0 [shape = 'u32[]', space=smem, size = 0x4, offset = 0x4, fixed_abs, tag = 'smem constant byte address 0x4 - core index']
  #allocation1 [shape = 'u32[72,128]{1,0:T(1,128)}', space=vmem, size = 0x9000, scoped, tag = 'internal scratch']
  #allocation2 [shape = 'f32[1,256]{1,0:T(1,128)}', space=vmem, size = 0x400, scoped, tag = 'scratch operand']
  %s0 = inlined_call_operand.hbm [shape: f32[1,256], index: 0, kind: input, shape index: {}]
  %s1 = inlined_call_operand.hbm [shape: f32[16,256], index: 1, kind: input, shape index: {}]
  %s2 = inlined_call_operand.hbm [shape: f32[16,256], index: 2, kind: input, shape index: {}]
  %s3 = inlined_call_operand.hbm [shape: f32[1,128], index: 3, kind: output, shape index: {}]
  %s4 = sld [smem:[#allocation0]]
  $region42: #{tpu_custom_call.1} parent=0
    _
  %s6 = ssub.s32 1, %s4
  %s7 = scalar_select 0, %s6, %s4
  $region1: #{tpu_custom_call.1} parent=0
    #allocation3 [shape = 'u8[1024]{0}', space=vmem, size = 0x400, scoped, tag = 'input window, operand 0, single buffered']
    #allocation4 [shape = 's32[1]{0}', space=sflag, size = 0x4, scoped, tag = 'scoped memory for tpu_custom_call.1']
    #allocation5 [shape = 's32[1]{0}', space=sflag, size = 0x4, scoped, tag = 'scoped memory for tpu_custom_call.1']
    #allocation6 [shape = 'u8[16384]{0}', space=vmem, size = 0x4000, scoped, tag = 'input window, operand 1, single buffered']
    #allocation7 [shape = 's32[1]{0}', space=sflag, size = 0x4, scoped, tag = 'scoped memory for tpu_custom_call.1']
    #allocation8 [shape = 'u8[16384]{0}', space=vmem, size = 0x4000, scoped, tag = 'input window, operand 2, single buffered']
    #allocation9 [shape = 'u8[512]{0}', space=vmem, size = 0x400, scoped, tag = 'output window, operand 0, single buffered']
    %8 = vsyncpa [#allocation4], 0
    %9 = vsyncpa [#allocation7], 0
    %10 = vsyncpa [#allocation5], 0
    // Predicated region
    $region2: #{tpu_custom_call.1} parent=1 // pred_check
      _
    $region3: #{tpu_custom_call.1} parent=1 // pred_check_branch
      %12 = sbr.rel (0) target = $region5
    $region4: #{tpu_custom_call.1} parent=1 // pred_region
      %14 = vsyncadd [#allocation4], 0
      %s16 = sshll.u32 %s0, 4
      %s17 = int_to_ptr.hbm [resolvable:$true] %s16
      %s18 = sshll.u32 [#allocation3], 4
      %s19 = int_to_ptr.vmem [resolvable:$true] %s18
      %21 = dma.hbm_to_vmem [thread:$0]  %s17, 32, %s19, [#allocation4]
    $region5: #{tpu_custom_call.1} parent=1 // pred_fallthru
      _
    // Predicated region
    $region6: #{tpu_custom_call.1} parent=1 // pred_check
      _
    $region7: #{tpu_custom_call.1} parent=1 // pred_check_branch
      %23 = sbr.rel (0) target = $region9
    $region8: #{tpu_custom_call.1} parent=1 // pred_region
      %s24 = sadd.s32 0, 0
      %s25 = smul.u32 2, %s24
      %27 = vsyncadd [#allocation7], 0
      %s28 = smul.addr %s25, 2
      %s29 = smul.addr %s28, 8
      %s30 = scalar_lea.hbm %s1, %s29
      %s31 = sshll.u32 %s30, 4
      %s32 = int_to_ptr.hbm [resolvable:$true] %s31
      %s33 = sshll.u32 [#allocation6], 4
      %s34 = int_to_ptr.vmem [resolvable:$true] %s33
      %39 = dma.hbm_to_vmem [thread:$0]  %s32, 512, %s34, [#allocation7], 256, 256, 16
    $region9: #{tpu_custom_call.1} parent=1 // pred_fallthru
      _
    // Predicated region
    $region10: #{tpu_custom_call.1} parent=1 // pred_check
      _
    $region11: #{tpu_custom_call.1} parent=1 // pred_check_branch
      %41 = sbr.rel (0) target = $region13
    $region12: #{tpu_custom_call.1} parent=1 // pred_region
      %s42 = sadd.s32 0, 0
      %s43 = smul.u32 2, %s42
      %45 = vsyncadd [#allocation7], 0
      %s46 = smul.addr %s43, 2
      %s47 = smul.addr %s46, 8
      %s48 = scalar_lea.hbm %s2, %s47
      %s49 = sshll.u32 %s48, 4
      %s50 = int_to_ptr.hbm [resolvable:$true] %s49
      %s51 = sshll.u32 [#allocation8], 4
      %s52 = int_to_ptr.vmem [resolvable:$true] %s51
      %57 = dma.hbm_to_vmem [thread:$0]  %s50, 512, %s52, [#allocation7], 256, 256, 16
    $region13: #{tpu_custom_call.1} parent=1 // pred_fallthru
      _
    // Predicated region
    $region14: #{tpu_custom_call.1} parent=1 // pred_check
      _
    $region15: #{tpu_custom_call.1} parent=1 // pred_check_branch
      %59 = sbr.rel (0) target = $region17
    $region16: #{tpu_custom_call.1} parent=1 // pred_region
      %61 = dma.done [#allocation4], 32
    $region17: #{tpu_custom_call.1} parent=1 // pred_fallthru
      _
    // Predicated region
    $region18: #{tpu_custom_call.1} parent=1 // pred_check
      _
    $region19: #{tpu_custom_call.1} parent=1 // pred_check_branch
      %63 = sbr.rel (0) target = $region21
    $region20: #{tpu_custom_call.1} parent=1 // pred_region
      %65 = dma.done [#allocation7], 512
    $region21: #{tpu_custom_call.1} parent=1 // pred_fallthru
      _
    // Predicated region
    $region22: #{tpu_custom_call.1} parent=1 // pred_check
      _
    $region23: #{tpu_custom_call.1} parent=1 // pred_check_branch
      %67 = sbr.rel (0) target = $region25
    $region24: #{tpu_custom_call.1} parent=1 // pred_region
      %69 = dma.done [#allocation7], 512
    $region25: #{tpu_custom_call.1} parent=1 // pred_fallthru
      _
    %s70 = sadd.s32 0, 0
    %s71 = smul.u32 2, %s70
    %s72 = sadd.s32 0, 0
    %s73 = smul.u32 2, %s72
    %p74 = scmp.eq.s32.totalorder 0, 0
    // Predicated region
    $region26: #{tpu_custom_call.1} parent=1 // pred_check
      %p75 = pneg %p74
    $region27: #{tpu_custom_call.1} parent=1 // pred_check_branch
      %77 = sbr.rel (%p75) target = $region29
    $region28: #{tpu_custom_call.1} parent=1 // pred_region
      %v78 = vlaneseq
      %vm79 = vcmp.ge.s32.totalorder %v78, 0
      %vm80 = vcmp.lt.s32.totalorder %v78, 256
      %vm81 = vmand %vm79, %vm80
      %82 = vst.msk [vmem:[#allocation2] sm:$0x3] %vm81, 0.0
    $region29: #{tpu_custom_call.1} parent=1 // pred_fallthru
      _
    %v83 = vld [vmem:[#allocation2] sm:$0x3]
    %v84 = vld [vmem:[#allocation6] sm:$0xff]
    %v85 = vld [vmem:[#allocation6 + $0x8] sm:$0xff]
    %v86 = vld [vmem:[#allocation6 + $0x10] sm:$0xff]
    %v87 = vld [vmem:[#allocation6 + $0x18] sm:$0xff]
    %v88 = vld [vmem:[#allocation8] sm:$0xff]
    %v89 = vld [vmem:[#allocation8 + $0x8] sm:$0xff]
    %v90 = vld [vmem:[#allocation8 + $0x10] sm:$0xff]
    %v91 = vld [vmem:[#allocation8 + $0x18] sm:$0xff]
    %v92 = vld [vmem:[#allocation3] sm:$0x3]
    %v94 = vperm.slane %v92, 0
    %v95 = vperm.slane %v92, 1
    %v98 = vmul.f32 %v94, %v88
    %v99 = vmul.f32 %v95, %v89
    %v100 = vmul.f32 %v94, %v90
    %v101 = vmul.f32 %v95, %v91
    %v102 = vadd.f32 %v98, 1.0
    %v103 = vadd.f32 %v99, 1.0
    %v104 = vadd.f32 %v100, 1.0
    %v105 = vadd.f32 %v101, 1.0
    %v106 = vand.u32 2147483647, %v84
    %v107 = vand.u32 2147483647, %v85
    %v108 = vand.u32 2147483647, %v86
    %v109 = vand.u32 2147483647, %v87
    %v110 = vsub.f32 0.0, %v106
    %v111 = vsub.f32 0.0, %v107
    %v112 = vsub.f32 0.0, %v108
    %v113 = vsub.f32 0.0, %v109
    %v114 = vmul.f32 %v110, 1.442695
    %v115 = vpow.pop %v114
    %v116 = vmul.f32 %v111, 1.442695
    %v117 = vpow.pop %v116
    %v118 = vmul.f32 %v112, 1.442695
    %v119 = vpow.pop %v118
    %v120 = vmul.f32 %v113, 1.442695
    %v121 = vpow.pop %v120
    %v122 = vadd.f32 %v115, 1.0
    %v123 = vlog2.pop %v122
    %v124 = vmul.f32 %v123, 0.6931472
    %v125 = vmul.f32 -0.5, %v115
    %v126 = vadd.f32 %v125, 1.0
    %v127 = vmul.f32 %v126, %v115
    %v128 = vand.u32 2147483647, %v115
    %vm129 = vcmp.lt.f32.partialorder %v128, 0.0004427343
    %v130 = vsel %vm129, %v127, %v124
    %v131 = vadd.f32 %v117, 1.0
    %v132 = vlog2.pop %v131
    %v133 = vmul.f32 %v132, 0.6931472
    %v134 = vmul.f32 -0.5, %v117
    %v135 = vadd.f32 %v134, 1.0
    %v136 = vmul.f32 %v135, %v117
    %v137 = vand.u32 2147483647, %v117
    %vm138 = vcmp.lt.f32.partialorder %v137, 0.0004427343
    %v139 = vsel %vm138, %v136, %v133
    %v140 = vadd.f32 %v119, 1.0
    %v141 = vlog2.pop %v140
    %v142 = vmul.f32 %v141, 0.6931472
    %v143 = vmul.f32 -0.5, %v119
    %v144 = vadd.f32 %v143, 1.0
    %v145 = vmul.f32 %v144, %v119
    %v146 = vand.u32 2147483647, %v119
    %vm147 = vcmp.lt.f32.partialorder %v146, 0.0004427343
    %v148 = vsel %vm147, %v145, %v142
    %v149 = vadd.f32 %v121, 1.0
    %v150 = vlog2.pop %v149
    %v151 = vmul.f32 %v150, 0.6931472
    %v152 = vmul.f32 -0.5, %v121
    %v153 = vadd.f32 %v152, 1.0
    %v154 = vmul.f32 %v153, %v121
    %v155 = vand.u32 2147483647, %v121
    %vm156 = vcmp.lt.f32.partialorder %v155, 0.0004427343
    %v157 = vsel %vm156, %v154, %v151
    %v158 = vsub.f32 0.0, %v84
    %v159 = vsub.f32 0.0, %v85
    %v160 = vsub.f32 0.0, %v86
    %v161 = vsub.f32 0.0, %v87
    %v162 = vmax.f32 %v158, 0.0
    %v163 = vmax.f32 %v159, 0.0
    %v164 = vmax.f32 %v160, 0.0
    %v165 = vmax.f32 %v161, 0.0
    %v166 = vadd.f32 %v130, %v162
    %v167 = vadd.f32 %v139, %v163
    %v168 = vadd.f32 %v148, %v164
    %v169 = vadd.f32 %v157, %v165
    %v170 = vsub.f32 1.0, %v88
    %v171 = vsub.f32 1.0, %v89
    %v172 = vsub.f32 1.0, %v90
    %v173 = vsub.f32 1.0, %v91
    %v174 = vmul.f32 %v170, %v84
    %v175 = vmul.f32 %v171, %v85
    %v176 = vmul.f32 %v172, %v86
    %v177 = vmul.f32 %v173, %v87
    %v178 = vmul.f32 %v102, %v166
    %v179 = vmul.f32 %v103, %v167
    %v180 = vmul.f32 %v104, %v168
    %v181 = vmul.f32 %v105, %v169
    %v182 = vadd.f32 %v174, %v178
    %v183 = vadd.f32 %v175, %v179
    %v184 = vadd.f32 %v176, %v180
    %v185 = vadd.f32 %v177, %v181
    %v186 = vsub.f32 0.0, %v182
    %v187 = vsub.f32 0.0, %v183
    %v188 = vsub.f32 0.0, %v184
    %v189 = vsub.f32 0.0, %v185
    %v190 = vmul.f32 %v186, 1.442695
    %v191 = vpow.pop %v190
    %v192 = vmul.f32 %v187, 1.442695
    %v193 = vpow.pop %v192
    %v194 = vmul.f32 %v188, 1.442695
    %v195 = vpow.pop %v194
    %v196 = vmul.f32 %v189, 1.442695
    %v197 = vpow.pop %v196
    %v198 = vsub.f32 1.0, %v191
    %v199 = vsub.f32 1.0, %v193
    %v200 = vsub.f32 1.0, %v195
    %v201 = vsub.f32 1.0, %v197
    %v202 = vmul.f32 %v198, %v198
    %v203 = vmul.f32 %v199, %v199
    %v204 = vmul.f32 %v200, %v200
    %v205 = vmul.f32 %v201, %v201
    %v206 = vmul.f32 %v202, %v182
    %v207 = vmul.f32 %v203, %v183
    %v208 = vmul.f32 %v204, %v184
    %v209 = vmul.f32 %v205, %v185
    %v210 = vadd.f32 %v206, %v208
    %v211 = vrot.slane %v210, 4
    %v212 = vadd.f32 %v210, %v211
    %v213 = vrot.slane %v212, 2
    %v214 = vadd.f32 %v212, %v213
    %v215 = vrot.slane %v214, 1
    %v216 = vadd.f32 %v214, %v215
    %v217 = vadd.f32 %v207, %v209
    %v218 = vrot.slane %v217, 4
    %v219 = vadd.f32 %v217, %v218
    %v220 = vrot.slane %v219, 2
    %v221 = vadd.f32 %v219, %v220
    %v222 = vrot.slane %v221, 1
    %v223 = vadd.f32 %v221, %v222
    %v226 = vrot.slane %v223, 7
    %vm227 = vcmask 1040384
    %v228 = vsel %vm227, %v216, %v226
    %v230 = vadd.f32 %v83, %v228
    %v231 = vlaneseq
    %vm232 = vcmp.ge.s32.totalorder %v231, 0
    %vm233 = vcmp.lt.s32.totalorder %v231, 256
    %vm234 = vmand %vm232, %vm233
    %235 = vst.msk [vmem:[#allocation2] sm:$0x3] %vm234, %v230
    // Predicated region
    $region30: #{tpu_custom_call.1} parent=1 // pred_check
      %p236 = pneg %p74
    $region31: #{tpu_custom_call.1} parent=1 // pred_check_branch
      %238 = sbr.rel (%p236) target = $region33
    $region32: #{tpu_custom_call.1} parent=1 // pred_region
      %v239 = vld [vmem:[#allocation2] sm:$0x3]
      %v241 = vperm.slane %v239, 0
      %v242 = vperm.slane %v239, 1
      %v245 = vsel %vm227, %v241, 0.0
      %v246 = vsel %vm227, %v242, 0.0
      %v247 = vadd.f32 %v245, %v246
      %248 = vadd.xlane.f32.xlu0 %v247
      %v249 = vpop.xlane.xlu0 %248
      %v250 = vrot.slane %v249, 4
      %v251 = vadd.f32 %v249, %v250
      %v252 = vrot.slane %v251, 2
      %v253 = vadd.f32 %v251, %v252
      %v254 = vrot.slane %v253, 1
      %v255 = vadd.f32 %v253, %v254
      %s256 = vtos %v255
      %v257 = vstv %s256
      %258 = vst [vmem:[#allocation9] sm:$0x1] %v257
    $region33: #{tpu_custom_call.1} parent=1 // pred_fallthru
      _
    // Predicated region
    $region34: #{tpu_custom_call.1} parent=1 // pred_check
      _
    $region35: #{tpu_custom_call.1} parent=1 // pred_check_branch
      %260 = sbr.rel (0) target = $region37
    $region36: #{tpu_custom_call.1} parent=1 // pred_region
      %262 = vsyncadd [#allocation5], 0
      %s264 = sshll.u32 [#allocation9], 4
      %s265 = int_to_ptr.vmem [resolvable:$true] %s264
      %s266 = sshll.u32 %s3, 4
      %s267 = int_to_ptr.hbm [resolvable:$true] %s266
      %269 = dma.vmem_to_hbm [thread:$0]  %s265, 16, %s267, [#allocation5]
    $region37: #{tpu_custom_call.1} parent=1 // pred_fallthru
      _
    // Predicated region
    $region38: #{tpu_custom_call.1} parent=1 // pred_check
      _
    $region39: #{tpu_custom_call.1} parent=1 // pred_check_branch
      %271 = sbr.rel (0) target = $region41
    $region40: #{tpu_custom_call.1} parent=1 // pred_region
      %273 = dma.done [#allocation5], 16
    $region41: #{tpu_custom_call.1} parent=1 // pred_fallthru
      _
    %274 = vsyncpa [#allocation4], 1
    %275 = vsyncpa [#allocation7], 1
    %276 = vsyncpa [#allocation5], 1

</llo_original>
